<compile_context>
chip_gen: v5e
topology: v5e:2x2
jax: 0.10.0
libtpu: 0.0.40
codegen_flags: <defaults>
</compile_context>

<pallas_src>
import functools

import jax
import jax.numpy as jnp
from jax.experimental import pallas as pl
from jax.experimental.pallas import tpu as pltpu

_BIG = 3.0e30  # sentinel placed (via the bias row) into padded group lanes


def _round_up(x: int, m: int) -> int:
    return (x + m - 1) // m * m


# --------------------------------------------------------------------------- #
# Kernel
# --------------------------------------------------------------------------- #
def _minmax_kernel(x_ref, w_ref, b_ref, o_ref, *, nodes_per_group, g_lanes):
    # x_ref : (TILE_B, D)              streamed raw batch tile (no K padding)
    # w_ref : (D, N * g_lanes)         resident packed weights  (padded groups = 0)
    # b_ref : (1, N * g_lanes)         resident packed biases   (padded groups = +BIG)
    # o_ref : (1, TILE_B)              lane-dense output tile
    x = x_ref[...]  # load once, reuse for all node matmuls

    def node_score(n):
        sl = slice(n * g_lanes, (n + 1) * g_lanes)          # 128-aligned lane block
        s = jnp.dot(x, w_ref[:, sl], preferred_element_type=jnp.float32)
        return s + b_ref[:, sl]                             # (TILE_B, g_lanes), f32

    # Fused per-node dot + running max: never materialize the (TILE_B, N*g_lanes) slab.
    gmax = node_score(0)
    for n in range(1, nodes_per_group):
        gmax = jnp.maximum(gmax, node_score(n))

    # Cross-group min: single XLU lane reduction; padded lanes hold +_BIG.
    y = jnp.min(gmax, axis=-1)                               # (TILE_B,)
    o_ref[...] = y.reshape(1, -1).astype(o_ref.dtype)


# --------------------------------------------------------------------------- #
# Wrapper
# --------------------------------------------------------------------------- #
def minmaxnet_forward(x, raw_weights, biases, mono_signs,
                      positivity_constraint="squared",
                      compute_dtype=jnp.float32):
    """Pallas-TPU forward of MinMaxNet.

    x           : (B, D) float
    raw_weights : (G, N, D)
    biases      : (G, N)
    mono_signs  : broadcastable to (1, 1, D)  (values in {-1, 0, +1})
    compute_dtype : dtype used to stream x / W (f32 default; bf16 halves HBM bytes
                    at ~1e-2 relative error).
    returns     : (B,) float32
    """
    B, D = x.shape
    G, N, D2 = raw_weights.shape
    assert D2 == D, "raw_weights last dim must equal input_dim"

    # ---- weight parameterization (identical math to the PyTorch module) ----
    raw_f32 = raw_weights.astype(jnp.float32)
    if positivity_constraint == "squared":
        w_pos = raw_f32 ** 2
    elif positivity_constraint == "exponential":
        w_pos = jnp.exp(raw_f32)
    else:
        raise ValueError("positivity_constraint must be 'squared' or 'exponential'")
    sign = jnp.sign(jnp.reshape(mono_signs.astype(jnp.float32), (1, 1, D)))
    sign = jnp.broadcast_to(sign, raw_f32.shape)
    w_actual = jnp.where(sign == 0, raw_f32, sign * w_pos)          # (G, N, D)

    # ---- pack weights / biases into lane-dense resident operands -----------
    g_lanes = _round_up(max(G, 1), 128)          # groups on the lane axis
    gn = N * g_lanes                             # total matmul output width

    # W[d, n*g_lanes + g] = w_actual[g, n, d];  padded group columns are zero.
    w_mat = jnp.zeros((D, N, g_lanes), jnp.float32)
    w_mat = w_mat.at[:, :, :G].set(jnp.transpose(w_actual, (2, 1, 0)))
    w_flat = w_mat.reshape(D, gn).astype(compute_dtype)

    # bias[0, n*g_lanes + g] = biases[g, n];  padded group lanes get +_BIG so the
    # final cross-lane min ignores them.
    bias_row = jnp.full((N, g_lanes), _BIG, jnp.float32)
    bias_row = bias_row.at[:, :G].set(jnp.transpose(biases.astype(jnp.float32), (1, 0)))
    b_flat = bias_row.reshape(1, gn)

    # ---- batch tiling --------------------------------------------------------
    b_min = _round_up(max(B, 1), 128)            # minimal padded batch (lane-dense out)
    tile_b = min(2048, b_min)                    # big tiles amortize ~0.35us/step overhead
    if b_min >= 256:
        # keep >= 2 grid steps so dimension_semantics=("parallel",) can split the
        # batch across both TensorCores on v7x (no-op on v5e/v6e).
        tile_b = min(tile_b, (b_min // 2) // 128 * 128)
    tile_b = max(tile_b, 128)
    b_pad = _round_up(max(B, 1), tile_b)

    x_c = x.astype(compute_dtype)
    if b_pad != B:                               # row-pad only when required
        x_c = jnp.pad(x_c, ((0, b_pad - B), (0, 0)))

    kernel = functools.partial(_minmax_kernel,
                               nodes_per_group=N, g_lanes=g_lanes)

    out = pl.pallas_call(
        kernel,
        out_shape=jax.ShapeDtypeStruct((1, b_pad), jnp.float32),
        grid_spec=pltpu.PrefetchScalarGridSpec(
            num_scalar_prefetch=0,
            grid=(b_pad // tile_b,),
            in_specs=[
                pl.BlockSpec((tile_b, D), lambda i: (i, 0)),   # stream raw x tiles
                pl.BlockSpec((D, gn), lambda i: (0, 0)),       # W resident in VMEM
                pl.BlockSpec((1, gn), lambda i: (0, 0)),       # biases resident in VMEM
            ],
            out_specs=pl.BlockSpec((1, tile_b), lambda i: (0, i)),  # lane-dense output
        ),
        compiler_params=pltpu.CompilerParams(
            # batch tiles are independent -> 2-TC megacore split on v7x
            dimension_semantics=("parallel",),
        ),
    )(x_c, w_flat, b_flat)

    return out[0, :B]


# --------------------------------------------------------------------------- #
# Pure-JAX reference (mirrors the PyTorch forward exactly)
# --------------------------------------------------------------------------- #
def minmaxnet_reference(x, raw_weights, biases, mono_signs,
                        positivity_constraint="squared"):
    raw_f32 = raw_weights.astype(jnp.float32)
    if positivity_constraint == "squared":
        w_pos = raw_f32 ** 2
    else:
        w_pos = jnp.exp(raw_f32)
    D = x.shape[1]
    sign = jnp.sign(jnp.reshape(mono_signs.astype(jnp.float32), (1, 1, D)))
    sign = jnp.broadcast_to(sign, raw_f32.shape)
    w_actual = jnp.where(sign == 0, raw_f32, sign * w_pos)          # (G, N, D)
    lin = jnp.einsum("bd,gnd->bgn", x.astype(jnp.float32), w_actual)
    lin = lin + biases.astype(jnp.float32)[None]                    # (B, G, N)
    group_out = jnp.max(lin, axis=2)                                # (B, G)
    return jnp.min(group_out, axis=1)                               # (B,)


# --------------------------------------------------------------------------- #
if __name__ == "__main__":
    key = jax.random.PRNGKey(0)
    D, G, N = 6, 3, 4
    k1, k2, k3 = jax.random.split(key, 3)

    raw_w = jax.random.truncated_normal(k2, -2.0, 2.0, (G, N, D), jnp.float32)
    biases = 0.1 * jax.random.normal(k3, (G, N), jnp.float32)
    mono_signs = jnp.array([1, -1, 0, 1, 1, -1], jnp.float32).reshape(1, 1, D)

    ok = True
    # (batch, constraint) cases: single-tile grid and multi-tile grid with row padding.
    cases = [(16, "squared"), (16, "exponential"), (272, "squared")]
    for B, pc in cases:
        xb = jax.random.normal(jax.random.fold_in(k1, B), (B, D), jnp.float32)
        y = jax.block_until_ready(
            minmaxnet_forward(xb, raw_w, biases, mono_signs, positivity_constraint=pc))
        y_ref = minmaxnet_reference(xb, raw_w, biases, mono_signs, positivity_constraint=pc)
        err = float(jnp.max(jnp.abs(y - y_ref)))
        if not (err < 1e-4):
            ok = False
            print(f"mismatch (B={B}, {pc}): max abs err = {err}")

    if ok:
        print("KERNEL_OK")
</pallas_src>

<mosaic_0001>
module attributes {stable_mosaic.version = 11 : i64} {
  func.func @_minmax_kernel(%arg0: i32, %arg1: memref<128x6xf32, #tpu.memory_space<vmem>>, %arg2: memref<6x512xf32, #tpu.memory_space<vmem>>, %arg3: memref<1x512xf32, #tpu.memory_space<vmem>>, %arg4: memref<1x128xf32, #tpu.memory_space<vmem>>) attributes {dimension_semantics = [#tpu.dimension_semantics<parallel>], iteration_bounds = array<i64: 1>, scalar_prefetch = 0 : i64, scratch_operands = 0 : i64, tpu.core_type = #tpu.core_type<tc>, window_params = [{transform_indices = @transform_0, window_bounds = array<i64: 128, 6>}, {pipeline_mode = #tpu.pipeline_mode<synchronous>, transform_indices = @transform_1, window_bounds = array<i64: 6, 512>}, {pipeline_mode = #tpu.pipeline_mode<synchronous>, transform_indices = @transform_2, window_bounds = array<i64: 1, 512>}, {transform_indices = @transform_3, window_bounds = array<i64: 1, 128>}]} {
    %c0 = arith.constant 0 : index
    %c0_0 = arith.constant 0 : index
    %0 = vector.load %arg1[%c0, %c0_0] : memref<128x6xf32, #tpu.memory_space<vmem>>, vector<128x6xf32>
    %c0_1 = arith.constant 0 : index
    %c0_2 = arith.constant 0 : index
    %1 = vector.load %arg2[%c0_1, %c0_2] : memref<6x512xf32, #tpu.memory_space<vmem>>, vector<6x128xf32>
    %cst = arith.constant dense<0.000000e+00> : vector<128x128xf32>
    %2 = tpu.matmul %0, %1, %cst {dimension_numbers = #tpu.dot_dimension_numbers<[1], [0], [0], [1], [0, 0, 1, 1], [], []>} : vector<128x6xf32>, vector<6x128xf32>, vector<128x128xf32> -> vector<128x128xf32>
    %c0_3 = arith.constant 0 : index
    %c0_4 = arith.constant 0 : index
    %3 = vector.load %arg3[%c0_3, %c0_4] : memref<1x512xf32, #tpu.memory_space<vmem>>, vector<1x128xf32>
    %4 = vector.broadcast %3 : vector<1x128xf32> to vector<128x128xf32>
    %5 = arith.addf %2, %4 : vector<128x128xf32>
    %c0_5 = arith.constant 0 : index
    %c128 = arith.constant 128 : index
    %6 = vector.load %arg2[%c0_5, %c128] : memref<6x512xf32, #tpu.memory_space<vmem>>, vector<6x128xf32>
    %cst_6 = arith.constant dense<0.000000e+00> : vector<128x128xf32>
    %7 = tpu.matmul %0, %6, %cst_6 {dimension_numbers = #tpu.dot_dimension_numbers<[1], [0], [0], [1], [0, 0, 1, 1], [], []>} : vector<128x6xf32>, vector<6x128xf32>, vector<128x128xf32> -> vector<128x128xf32>
    %c0_7 = arith.constant 0 : index
    %c128_8 = arith.constant 128 : index
    %8 = vector.load %arg3[%c0_7, %c128_8] : memref<1x512xf32, #tpu.memory_space<vmem>>, vector<1x128xf32>
    %9 = vector.broadcast %8 : vector<1x128xf32> to vector<128x128xf32>
    %10 = arith.addf %7, %9 : vector<128x128xf32>
    %11 = arith.maximumf %5, %10 : vector<128x128xf32>
    %c0_9 = arith.constant 0 : index
    %c256 = arith.constant 256 : index
    %12 = vector.load %arg2[%c0_9, %c256] : memref<6x512xf32, #tpu.memory_space<vmem>>, vector<6x128xf32>
    %cst_10 = arith.constant dense<0.000000e+00> : vector<128x128xf32>
    %13 = tpu.matmul %0, %12, %cst_10 {dimension_numbers = #tpu.dot_dimension_numbers<[1], [0], [0], [1], [0, 0, 1, 1], [], []>} : vector<128x6xf32>, vector<6x128xf32>, vector<128x128xf32> -> vector<128x128xf32>
    %c0_11 = arith.constant 0 : index
    %c256_12 = arith.constant 256 : index
    %14 = vector.load %arg3[%c0_11, %c256_12] : memref<1x512xf32, #tpu.memory_space<vmem>>, vector<1x128xf32>
    %15 = vector.broadcast %14 : vector<1x128xf32> to vector<128x128xf32>
    %16 = arith.addf %13, %15 : vector<128x128xf32>
    %17 = arith.maximumf %11, %16 : vector<128x128xf32>
    %c0_13 = arith.constant 0 : index
    %c384 = arith.constant 384 : index
    %18 = vector.load %arg2[%c0_13, %c384] : memref<6x512xf32, #tpu.memory_space<vmem>>, vector<6x128xf32>
    %cst_14 = arith.constant dense<0.000000e+00> : vector<128x128xf32>
    %19 = tpu.matmul %0, %18, %cst_14 {dimension_numbers = #tpu.dot_dimension_numbers<[1], [0], [0], [1], [0, 0, 1, 1], [], []>} : vector<128x6xf32>, vector<6x128xf32>, vector<128x128xf32> -> vector<128x128xf32>
    %c0_15 = arith.constant 0 : index
    %c384_16 = arith.constant 384 : index
    %20 = vector.load %arg3[%c0_15, %c384_16] : memref<1x512xf32, #tpu.memory_space<vmem>>, vector<1x128xf32>
    %21 = vector.broadcast %20 : vector<1x128xf32> to vector<128x128xf32>
    %22 = arith.addf %19, %21 : vector<128x128xf32>
    %23 = arith.maximumf %17, %22 : vector<128x128xf32>
    %cst_17 = arith.constant dense<0x7F800000> : vector<128xf32>
    %24 = vector.multi_reduction <minimumf>, %23, %cst_17 [1] : vector<128x128xf32> to vector<128xf32>
    %25 = vector.shape_cast %24 : vector<128xf32> to vector<1x128xf32>
    %c0_18 = arith.constant 0 : index
    %c0_19 = arith.constant 0 : index
    %26 = vector.load %arg4[%c0_18, %c0_19] : memref<1x128xf32, #tpu.memory_space<vmem>>, vector<1x128xf32>
    tpu.vector_store %arg4[%c0_18, %c0_19], %25 {strides = array<i32>} : memref<1x128xf32, #tpu.memory_space<vmem>>, vector<1x128xf32>,
    return
  }
  func.func @transform_0(%arg0: i32) -> (i32, i32) {
    %c0_i32 = arith.constant 0 : i32
    %c0_i32_0 = arith.constant 0 : i32
    return %arg0, %c0_i32 : i32, i32
  }
  func.func @transform_1(%arg0: i32) -> (i32, i32) {
    %c0_i32 = arith.constant 0 : i32
    %c0_i32_0 = arith.constant 0 : i32
    %c0_i32_1 = arith.constant 0 : i32
    return %c0_i32, %c0_i32_0 : i32, i32
  }
  func.func @transform_2(%arg0: i32) -> (i32, i32) {
    %c0_i32 = arith.constant 0 : i32
    %c0_i32_0 = arith.constant 0 : i32
    %c0_i32_1 = arith.constant 0 : i32
    return %c0_i32, %c0_i32_0 : i32, i32
  }
  func.func @transform_3(%arg0: i32) -> (i32, i32) {
    %c0_i32 = arith.constant 0 : i32
    %c0_i32_0 = arith.constant 0 : i32
    return %c0_i32, %arg0 : i32, i32
  }
}

</mosaic_0001>

<llo_original>
// kernel: tpu_custom_call.1
$region0: #{tpu_custom_call.1}
  #allocation0 [shape = 'u32[]', space=smem, size = 0x4, offset = 0x4, fixed_abs, tag = 'smem constant byte address 0x4 - core index']
  #allocation1 [shape = 'u32[72,128]{1,0:T(1,128)}', space=vmem, size = 0x9000, scoped, tag = 'internal scratch']
  %s0 = inlined_call_operand.vmem [shape: f32[128,6], index: 0, kind: input, shape index: {}]
  %s1 = inlined_call_operand.vmem [shape: f32[6,512], index: 1, kind: input, shape index: {}]
  %s2 = inlined_call_operand.vmem [shape: f32[1,512], index: 2, kind: input, shape index: {}]
  %s3 = inlined_call_operand.hbm [shape: f32[1,128], index: 3, kind: output, shape index: {}]
  %s4 = sld [smem:[#allocation0]]
  $region22: #{tpu_custom_call.1} parent=0
    _
  %s6 = ssub.s32 1, %s4
  %s7 = scalar_select 0, %s6, %s4
  $region1: #{tpu_custom_call.1} parent=0
    #allocation2 [shape = 'u8[512]{0}', space=vmem, size = 0x400, scoped, tag = 'output window, operand 0, single buffered']
    #allocation3 [shape = 's32[1]{0}', space=sflag, size = 0x4, scoped, tag = 'scoped memory for tpu_custom_call.1']
    %8 = vsyncpa [#allocation3], 0
    // Predicated region
    $region2: #{tpu_custom_call.1} parent=1 // pred_check
      _
    $region3: #{tpu_custom_call.1} parent=1 // pred_check_branch
      %10 = sbr.rel (0) target = $region5
    $region4: #{tpu_custom_call.1} parent=1 // pred_region
      _
    $region5: #{tpu_custom_call.1} parent=1 // pred_fallthru
      _
    // Predicated region
    $region6: #{tpu_custom_call.1} parent=1 // pred_check
      _
    $region7: #{tpu_custom_call.1} parent=1 // pred_check_branch
      %12 = sbr.rel (0) target = $region9
    $region8: #{tpu_custom_call.1} parent=1 // pred_region
      _
    $region9: #{tpu_custom_call.1} parent=1 // pred_fallthru
      _
    // Predicated region
    $region10: #{tpu_custom_call.1} parent=1 // pred_check
      _
    $region11: #{tpu_custom_call.1} parent=1 // pred_check_branch
      %14 = sbr.rel (0) target = $region13
    $region12: #{tpu_custom_call.1} parent=1 // pred_region
      _
    $region13: #{tpu_custom_call.1} parent=1 // pred_fallthru
      _
    %v15 = vld [vmem:[%s0] sm:$0xff]
    %v16 = vld [vmem:[%s0 + $0x8] sm:$0xff]
    %v17 = vld [vmem:[%s0 + $0x10] sm:$0xff]
    %v18 = vld [vmem:[%s0 + $0x18] sm:$0xff]
    %v19 = vld [vmem:[%s0 + $0x20] sm:$0xff]
    %v20 = vld [vmem:[%s0 + $0x28] sm:$0xff]
    %v21 = vld [vmem:[%s0 + $0x30] sm:$0xff]
    %v22 = vld [vmem:[%s0 + $0x38] sm:$0xff]
    %v23 = vld [vmem:[%s0 + $0x40] sm:$0xff]
    %v24 = vld [vmem:[%s0 + $0x48] sm:$0xff]
    %v25 = vld [vmem:[%s0 + $0x50] sm:$0xff]
    %v26 = vld [vmem:[%s0 + $0x58] sm:$0xff]
    %v27 = vld [vmem:[%s0 + $0x60] sm:$0xff]
    %v28 = vld [vmem:[%s0 + $0x68] sm:$0xff]
    %v29 = vld [vmem:[%s0 + $0x70] sm:$0xff]
    %v30 = vld [vmem:[%s0 + $0x78] sm:$0xff]
    %v31 = vld [vmem:[%s1] sm:$0x3f]
    %v32 = vld [vmem:[%s2] sm:$0x1]
    %v34 = vperm.slane %v32, 0
    %vm36 = vcmask 48128
    %v38 = vsel %vm36, %v15, 0
    %v41 = vsel %vm36, %v16, 0
    %v44 = vsel %vm36, %v17, 0
    %v47 = vsel %vm36, %v18, 0
    %v50 = vsel %vm36, %v19, 0
    %v53 = vsel %vm36, %v20, 0
    %v56 = vsel %vm36, %v21, 0
    %v59 = vsel %vm36, %v22, 0
    %v62 = vsel %vm36, %v23, 0
    %v65 = vsel %vm36, %v24, 0
    %v68 = vsel %vm36, %v25, 0
    %v71 = vsel %vm36, %v26, 0
    %v74 = vsel %vm36, %v27, 0
    %v77 = vsel %vm36, %v28, 0
    %v80 = vsel %vm36, %v29, 0
    %v83 = vsel %vm36, %v30, 0
    %vm85 = vcmask 1045504
    %v87 = vsel %vm85, %v31, 0
    %89 = vmatpush.msra.mxu0 0.0
    %90 = vmatpush.msra.mxu0 0.0
    %91 = vmatpush.msra.mxu0 0.0
    %92 = vmatpush.msra.mxu0 0.0
    %93 = vmatpush.msra.mxu0 0.0
    %94 = vmatpush.msra.mxu0 0.0
    %95 = vmatpush.msra.mxu0 0.0
    %96 = vmatpush.msra.mxu0 0.0
    %97 = vmatpush.msra.mxu0 0.0
    %98 = vmatpush.msra.mxu0 0.0
    %99 = vmatpush.msra.mxu0 0.0
    %100 = vmatpush.msra.mxu0 0.0
    %101 = vmatpush.msra.mxu0 0.0
    %102 = vmatpush.msra.mxu0 0.0
    %103 = vmatpush.msra.mxu0 0.0
    %104 = vmatpush.msra.mxu0 %v87
    %105 = vmatmul.f32.gmra.mxu0 %v38
    %v106 = vpop.f32.mrf.mxu0
    %v107 = vadd.f32 %v34, %v106
    %108 = vmatmul.f32.gmra.mxu0 %v41
    %v109 = vpop.f32.mrf.mxu0
    %v110 = vadd.f32 %v34, %v109
    %111 = vmatmul.f32.gmra.mxu0 %v44
    %v112 = vpop.f32.mrf.mxu0
    %v113 = vadd.f32 %v34, %v112
    %114 = vmatmul.f32.gmra.mxu0 %v47
    %v115 = vpop.f32.mrf.mxu0
    %v116 = vadd.f32 %v34, %v115
    %117 = vmatmul.f32.gmra.mxu0 %v50
    %v118 = vpop.f32.mrf.mxu0
    %v119 = vadd.f32 %v34, %v118
    %120 = vmatmul.f32.gmra.mxu0 %v53
    %v121 = vpop.f32.mrf.mxu0
    %v122 = vadd.f32 %v34, %v121
    %123 = vmatmul.f32.gmra.mxu0 %v56
    %v124 = vpop.f32.mrf.mxu0
    %v125 = vadd.f32 %v34, %v124
    %126 = vmatmul.f32.gmra.mxu0 %v59
    %v127 = vpop.f32.mrf.mxu0
    %v128 = vadd.f32 %v34, %v127
    %129 = vmatmul.f32.gmra.mxu0 %v62
    %v130 = vpop.f32.mrf.mxu0
    %v131 = vadd.f32 %v34, %v130
    %132 = vmatmul.f32.gmra.mxu0 %v65
    %v133 = vpop.f32.mrf.mxu0
    %v134 = vadd.f32 %v34, %v133
    %135 = vmatmul.f32.gmra.mxu0 %v68
    %v136 = vpop.f32.mrf.mxu0
    %v137 = vadd.f32 %v34, %v136
    %138 = vmatmul.f32.gmra.mxu0 %v71
    %v139 = vpop.f32.mrf.mxu0
    %v140 = vadd.f32 %v34, %v139
    %141 = vmatmul.f32.gmra.mxu0 %v74
    %v142 = vpop.f32.mrf.mxu0
    %v143 = vadd.f32 %v34, %v142
    %144 = vmatmul.f32.gmra.mxu0 %v77
    %v145 = vpop.f32.mrf.mxu0
    %v146 = vadd.f32 %v34, %v145
    %147 = vmatmul.f32.gmra.mxu0 %v80
    %v148 = vpop.f32.mrf.mxu0
    %v149 = vadd.f32 %v34, %v148
    %150 = vmatmul.f32.gmra.mxu0 %v83
    %v151 = vpop.f32.mrf.mxu0
    %v152 = vadd.f32 %v34, %v151
    %153 = vdwg.mxu0
    %v154 = vld [vmem:[%s1 + $0x8] sm:$0x3f]
    %v155 = vld [vmem:[%s2 + $0x1] sm:$0x1]
    %v157 = vperm.slane %v155, 0
    %v160 = vsel %vm85, %v154, 0
    %162 = vmatpush.msra.mxu0 0.0
    %163 = vmatpush.msra.mxu0 0.0
    %164 = vmatpush.msra.mxu0 0.0
    %165 = vmatpush.msra.mxu0 0.0
    %166 = vmatpush.msra.mxu0 0.0
    %167 = vmatpush.msra.mxu0 0.0
    %168 = vmatpush.msra.mxu0 0.0
    %169 = vmatpush.msra.mxu0 0.0
    %170 = vmatpush.msra.mxu0 0.0
    %171 = vmatpush.msra.mxu0 0.0
    %172 = vmatpush.msra.mxu0 0.0
    %173 = vmatpush.msra.mxu0 0.0
    %174 = vmatpush.msra.mxu0 0.0
    %175 = vmatpush.msra.mxu0 0.0
    %176 = vmatpush.msra.mxu0 0.0
    %177 = vmatpush.msra.mxu0 %v160
    %178 = vmatmul.f32.gmra.mxu0 %v38
    %v179 = vpop.f32.mrf.mxu0
    %v180 = vadd.f32 %v157, %v179
    %181 = vmatmul.f32.gmra.mxu0 %v41
    %v182 = vpop.f32.mrf.mxu0
    %v183 = vadd.f32 %v157, %v182
    %184 = vmatmul.f32.gmra.mxu0 %v44
    %v185 = vpop.f32.mrf.mxu0
    %v186 = vadd.f32 %v157, %v185
    %187 = vmatmul.f32.gmra.mxu0 %v47
    %v188 = vpop.f32.mrf.mxu0
    %v189 = vadd.f32 %v157, %v188
    %190 = vmatmul.f32.gmra.mxu0 %v50
    %v191 = vpop.f32.mrf.mxu0
    %v192 = vadd.f32 %v157, %v191
    %193 = vmatmul.f32.gmra.mxu0 %v53
    %v194 = vpop.f32.mrf.mxu0
    %v195 = vadd.f32 %v157, %v194
    %196 = vmatmul.f32.gmra.mxu0 %v56
    %v197 = vpop.f32.mrf.mxu0
    %v198 = vadd.f32 %v157, %v197
    %199 = vmatmul.f32.gmra.mxu0 %v59
    %v200 = vpop.f32.mrf.mxu0
    %v201 = vadd.f32 %v157, %v200
    %202 = vmatmul.f32.gmra.mxu0 %v62
    %v203 = vpop.f32.mrf.mxu0
    %v204 = vadd.f32 %v157, %v203
    %205 = vmatmul.f32.gmra.mxu0 %v65
    %v206 = vpop.f32.mrf.mxu0
    %v207 = vadd.f32 %v157, %v206
    %208 = vmatmul.f32.gmra.mxu0 %v68
    %v209 = vpop.f32.mrf.mxu0
    %v210 = vadd.f32 %v157, %v209
    %211 = vmatmul.f32.gmra.mxu0 %v71
    %v212 = vpop.f32.mrf.mxu0
    %v213 = vadd.f32 %v157, %v212
    %214 = vmatmul.f32.gmra.mxu0 %v74
    %v215 = vpop.f32.mrf.mxu0
    %v216 = vadd.f32 %v157, %v215
    %217 = vmatmul.f32.gmra.mxu0 %v77
    %v218 = vpop.f32.mrf.mxu0
    %v219 = vadd.f32 %v157, %v218
    %220 = vmatmul.f32.gmra.mxu0 %v80
    %v221 = vpop.f32.mrf.mxu0
    %v222 = vadd.f32 %v157, %v221
    %223 = vmatmul.f32.gmra.mxu0 %v83
    %v224 = vpop.f32.mrf.mxu0
    %v225 = vadd.f32 %v157, %v224
    %226 = vdwg.mxu0
    %v227 = vmax.f32 %v107, %v180
    %v228 = vmax.f32 %v110, %v183
    %v229 = vmax.f32 %v113, %v186
    %v230 = vmax.f32 %v116, %v189
    %v231 = vmax.f32 %v119, %v192
    %v232 = vmax.f32 %v122, %v195
    %v233 = vmax.f32 %v125, %v198
    %v234 = vmax.f32 %v128, %v201
    %v235 = vmax.f32 %v131, %v204
    %v236 = vmax.f32 %v134, %v207
    %v237 = vmax.f32 %v137, %v210
    %v238 = vmax.f32 %v140, %v213
    %v239 = vmax.f32 %v143, %v216
    %v240 = vmax.f32 %v146, %v219
    %v241 = vmax.f32 %v149, %v222
    %v242 = vmax.f32 %v152, %v225
    %v243 = vld [vmem:[%s1 + $0x10] sm:$0x3f]
    %v244 = vld [vmem:[%s2 + $0x2] sm:$0x1]
    %v246 = vperm.slane %v244, 0
    %v249 = vsel %vm85, %v243, 0
    %251 = vmatpush.msra.mxu0 0.0
    %252 = vmatpush.msra.mxu0 0.0
    %253 = vmatpush.msra.mxu0 0.0
    %254 = vmatpush.msra.mxu0 0.0
    %255 = vmatpush.msra.mxu0 0.0
    %256 = vmatpush.msra.mxu0 0.0
    %257 = vmatpush.msra.mxu0 0.0
    %258 = vmatpush.msra.mxu0 0.0
    %259 = vmatpush.msra.mxu0 0.0
    %260 = vmatpush.msra.mxu0 0.0
    %261 = vmatpush.msra.mxu0 0.0
    %262 = vmatpush.msra.mxu0 0.0
    %263 = vmatpush.msra.mxu0 0.0
    %264 = vmatpush.msra.mxu0 0.0
    %265 = vmatpush.msra.mxu0 0.0
    %266 = vmatpush.msra.mxu0 %v249
    %267 = vmatmul.f32.gmra.mxu0 %v38
    %v268 = vpop.f32.mrf.mxu0
    %v269 = vadd.f32 %v246, %v268
    %270 = vmatmul.f32.gmra.mxu0 %v41
    %v271 = vpop.f32.mrf.mxu0
    %v272 = vadd.f32 %v246, %v271
    %273 = vmatmul.f32.gmra.mxu0 %v44
    %v274 = vpop.f32.mrf.mxu0
    %v275 = vadd.f32 %v246, %v274
    %276 = vmatmul.f32.gmra.mxu0 %v47
    %v277 = vpop.f32.mrf.mxu0
    %v278 = vadd.f32 %v246, %v277
    %279 = vmatmul.f32.gmra.mxu0 %v50
    %v280 = vpop.f32.mrf.mxu0
    %v281 = vadd.f32 %v246, %v280
    %282 = vmatmul.f32.gmra.mxu0 %v53
    %v283 = vpop.f32.mrf.mxu0
    %v284 = vadd.f32 %v246, %v283
    %285 = vmatmul.f32.gmra.mxu0 %v56
    %v286 = vpop.f32.mrf.mxu0
    %v287 = vadd.f32 %v246, %v286
    %288 = vmatmul.f32.gmra.mxu0 %v59
    %v289 = vpop.f32.mrf.mxu0
    %v290 = vadd.f32 %v246, %v289
    %291 = vmatmul.f32.gmra.mxu0 %v62
    %v292 = vpop.f32.mrf.mxu0
    %v293 = vadd.f32 %v246, %v292
    %294 = vmatmul.f32.gmra.mxu0 %v65
    %v295 = vpop.f32.mrf.mxu0
    %v296 = vadd.f32 %v246, %v295
    %297 = vmatmul.f32.gmra.mxu0 %v68
    %v298 = vpop.f32.mrf.mxu0
    %v299 = vadd.f32 %v246, %v298
    %300 = vmatmul.f32.gmra.mxu0 %v71
    %v301 = vpop.f32.mrf.mxu0
    %v302 = vadd.f32 %v246, %v301
    %303 = vmatmul.f32.gmra.mxu0 %v74
    %v304 = vpop.f32.mrf.mxu0
    %v305 = vadd.f32 %v246, %v304
    %306 = vmatmul.f32.gmra.mxu0 %v77
    %v307 = vpop.f32.mrf.mxu0
    %v308 = vadd.f32 %v246, %v307
    %309 = vmatmul.f32.gmra.mxu0 %v80
    %v310 = vpop.f32.mrf.mxu0
    %v311 = vadd.f32 %v246, %v310
    %312 = vmatmul.f32.gmra.mxu0 %v83
    %v313 = vpop.f32.mrf.mxu0
    %v314 = vadd.f32 %v246, %v313
    %315 = vdwg.mxu0
    %v316 = vmax.f32 %v227, %v269
    %v317 = vmax.f32 %v228, %v272
    %v318 = vmax.f32 %v229, %v275
    %v319 = vmax.f32 %v230, %v278
    %v320 = vmax.f32 %v231, %v281
    %v321 = vmax.f32 %v232, %v284
    %v322 = vmax.f32 %v233, %v287
    %v323 = vmax.f32 %v234, %v290
    %v324 = vmax.f32 %v235, %v293
    %v325 = vmax.f32 %v236, %v296
    %v326 = vmax.f32 %v237, %v299
    %v327 = vmax.f32 %v238, %v302
    %v328 = vmax.f32 %v239, %v305
    %v329 = vmax.f32 %v240, %v308
    %v330 = vmax.f32 %v241, %v311
    %v331 = vmax.f32 %v242, %v314
    %v332 = vld [vmem:[%s1 + $0x18] sm:$0x3f]
    %v333 = vld [vmem:[%s2 + $0x3] sm:$0x1]
    %v335 = vperm.slane %v333, 0
    %v338 = vsel %vm85, %v332, 0
    %340 = vmatpush.msra.mxu0 0.0
    %341 = vmatpush.msra.mxu0 0.0
    %342 = vmatpush.msra.mxu0 0.0
    %343 = vmatpush.msra.mxu0 0.0
    %344 = vmatpush.msra.mxu0 0.0
    %345 = vmatpush.msra.mxu0 0.0
    %346 = vmatpush.msra.mxu0 0.0
    %347 = vmatpush.msra.mxu0 0.0
    %348 = vmatpush.msra.mxu0 0.0
    %349 = vmatpush.msra.mxu0 0.0
    %350 = vmatpush.msra.mxu0 0.0
    %351 = vmatpush.msra.mxu0 0.0
    %352 = vmatpush.msra.mxu0 0.0
    %353 = vmatpush.msra.mxu0 0.0
    %354 = vmatpush.msra.mxu0 0.0
    %355 = vmatpush.msra.mxu0 %v338
    %356 = vmatmul.f32.gmra.mxu0 %v38
    %v357 = vpop.f32.mrf.mxu0
    %v358 = vadd.f32 %v335, %v357
    %359 = vmatmul.f32.gmra.mxu0 %v41
    %v360 = vpop.f32.mrf.mxu0
    %v361 = vadd.f32 %v335, %v360
    %362 = vmatmul.f32.gmra.mxu0 %v44
    %v363 = vpop.f32.mrf.mxu0
    %v364 = vadd.f32 %v335, %v363
    %365 = vmatmul.f32.gmra.mxu0 %v47
    %v366 = vpop.f32.mrf.mxu0
    %v367 = vadd.f32 %v335, %v366
    %368 = vmatmul.f32.gmra.mxu0 %v50
    %v369 = vpop.f32.mrf.mxu0
    %v370 = vadd.f32 %v335, %v369
    %371 = vmatmul.f32.gmra.mxu0 %v53
    %v372 = vpop.f32.mrf.mxu0
    %v373 = vadd.f32 %v335, %v372
    %374 = vmatmul.f32.gmra.mxu0 %v56
    %v375 = vpop.f32.mrf.mxu0
    %v376 = vadd.f32 %v335, %v375
    %377 = vmatmul.f32.gmra.mxu0 %v59
    %v378 = vpop.f32.mrf.mxu0
    %v379 = vadd.f32 %v335, %v378
    %380 = vmatmul.f32.gmra.mxu0 %v62
    %v381 = vpop.f32.mrf.mxu0
    %v382 = vadd.f32 %v335, %v381
    %383 = vmatmul.f32.gmra.mxu0 %v65
    %v384 = vpop.f32.mrf.mxu0
    %v385 = vadd.f32 %v335, %v384
    %386 = vmatmul.f32.gmra.mxu0 %v68
    %v387 = vpop.f32.mrf.mxu0
    %v388 = vadd.f32 %v335, %v387
    %389 = vmatmul.f32.gmra.mxu0 %v71
    %v390 = vpop.f32.mrf.mxu0
    %v391 = vadd.f32 %v335, %v390
    %392 = vmatmul.f32.gmra.mxu0 %v74
    %v393 = vpop.f32.mrf.mxu0
    %v394 = vadd.f32 %v335, %v393
    %395 = vmatmul.f32.gmra.mxu0 %v77
    %v396 = vpop.f32.mrf.mxu0
    %v397 = vadd.f32 %v335, %v396
    %398 = vmatmul.f32.gmra.mxu0 %v80
    %v399 = vpop.f32.mrf.mxu0
    %v400 = vadd.f32 %v335, %v399
    %401 = vmatmul.f32.gmra.mxu0 %v83
    %v402 = vpop.f32.mrf.mxu0
    %v403 = vadd.f32 %v335, %v402
    %404 = vdwg.mxu0
    %v405 = vmax.f32 %v316, %v358
    %v406 = vmax.f32 %v317, %v361
    %v407 = vmax.f32 %v318, %v364
    %v408 = vmax.f32 %v319, %v367
    %v409 = vmax.f32 %v320, %v370
    %v410 = vmax.f32 %v321, %v373
    %v411 = vmax.f32 %v322, %v376
    %v412 = vmax.f32 %v323, %v379
    %v413 = vmax.f32 %v324, %v382
    %v414 = vmax.f32 %v325, %v385
    %v415 = vmax.f32 %v326, %v388
    %v416 = vmax.f32 %v327, %v391
    %v417 = vmax.f32 %v328, %v394
    %v418 = vmax.f32 %v329, %v397
    %v419 = vmax.f32 %v330, %v400
    %v420 = vmax.f32 %v331, %v403
    %421 = vmin.xlane.f32.xlu0 %v405
    %v422 = vpop.xlane.xlu0 %421
    %423 = vmin.xlane.f32.xlu0 %v406
    %v424 = vpop.xlane.xlu0 %423
    %425 = vmin.xlane.f32.xlu0 %v407
    %v426 = vpop.xlane.xlu0 %425
    %427 = vmin.xlane.f32.xlu0 %v408
    %v428 = vpop.xlane.xlu0 %427
    %429 = vmin.xlane.f32.xlu0 %v409
    %v430 = vpop.xlane.xlu0 %429
    %431 = vmin.xlane.f32.xlu0 %v410
    %v432 = vpop.xlane.xlu0 %431
    %433 = vmin.xlane.f32.xlu0 %v411
    %v434 = vpop.xlane.xlu0 %433
    %435 = vmin.xlane.f32.xlu0 %v412
    %v436 = vpop.xlane.xlu0 %435
    %437 = vmin.xlane.f32.xlu0 %v413
    %v438 = vpop.xlane.xlu0 %437
    %439 = vmin.xlane.f32.xlu0 %v414
    %v440 = vpop.xlane.xlu0 %439
    %441 = vmin.xlane.f32.xlu0 %v415
    %v442 = vpop.xlane.xlu0 %441
    %443 = vmin.xlane.f32.xlu0 %v416
    %v444 = vpop.xlane.xlu0 %443
    %445 = vmin.xlane.f32.xlu0 %v417
    %v446 = vpop.xlane.xlu0 %445
    %447 = vmin.xlane.f32.xlu0 %v418
    %v448 = vpop.xlane.xlu0 %447
    %449 = vmin.xlane.f32.xlu0 %v419
    %v450 = vpop.xlane.xlu0 %449
    %451 = vmin.xlane.f32.xlu0 %v420
    %v452 = vpop.xlane.xlu0 %451
    %v469 = vlaneseq
    %v470 = vand.u32 %v469, 127
    %v471 = vperm.slane %v422, %v470
    %v472 = vadd.s32 %v470, 4294967288
    %v473 = vperm.slane %v424, %v472
    %vm474 = vcmask 130112
    %v475 = vsel %vm474, %v473, %v471
    %v476 = vadd.s32 %v470, 4294967280
    %v477 = vperm.slane %v426, %v476
    %vm478 = vcmask 195712
    %v479 = vsel %vm478, %v477, %v475
    %v480 = vadd.s32 %v470, 4294967272
    %v481 = vperm.slane %v428, %v480
    %vm482 = vcmask 261312
    %v483 = vsel %vm482, %v481, %v479
    %v484 = vadd.s32 %v470, 4294967264
    %v485 = vperm.slane %v430, %v484
    %vm486 = vcmask 326912
    %v487 = vsel %vm486, %v485, %v483
    %v488 = vadd.s32 %v470, 4294967256
    %v489 = vperm.slane %v432, %v488
    %vm490 = vcmask 392512
    %v491 = vsel %vm490, %v489, %v487
    %v492 = vadd.s32 %v470, 4294967248
    %v493 = vperm.slane %v434, %v492
    %vm494 = vcmask 458112
    %v495 = vsel %vm494, %v493, %v491
    %v496 = vadd.s32 %v470, 4294967240
    %v497 = vperm.slane %v436, %v496
    %vm498 = vcmask 523712
    %v499 = vsel %vm498, %v497, %v495
    %v500 = vadd.s32 %v470, 4294967232
    %v501 = vperm.slane %v438, %v500
    %vm502 = vcmask 589312
    %v503 = vsel %vm502, %v501, %v499
    %v504 = vadd.s32 %v470, 4294967224
    %v505 = vperm.slane %v440, %v504
    %vm506 = vcmask 654912
    %v507 = vsel %vm506, %v505, %v503
    %v508 = vadd.s32 %v470, 4294967216
    %v509 = vperm.slane %v442, %v508
    %vm510 = vcmask 720512
    %v511 = vsel %vm510, %v509, %v507
    %v512 = vadd.s32 %v470, 4294967208
    %v513 = vperm.slane %v444, %v512
    %vm514 = vcmask 786112
    %v515 = vsel %vm514, %v513, %v511
    %v516 = vadd.s32 %v470, 4294967200
    %v517 = vperm.slane %v446, %v516
    %vm518 = vcmask 851712
    %v519 = vsel %vm518, %v517, %v515
    %v520 = vadd.s32 %v470, 4294967192
    %v521 = vperm.slane %v448, %v520
    %vm522 = vcmask 917312
    %v523 = vsel %vm522, %v521, %v519
    %v524 = vadd.s32 %v470, 4294967184
    %v525 = vperm.slane %v450, %v524
    %vm526 = vcmask 982912
    %v527 = vsel %vm526, %v525, %v523
    %v528 = vadd.s32 %v470, 4294967176
    %v529 = vperm.slane %v452, %v528
    %vm530 = vcmask 1048512
    %v531 = vsel %vm530, %v529, %v527
    %533 = vst [vmem:[#allocation2] sm:$0x1] %v531
    // Predicated region
    $region14: #{tpu_custom_call.1} parent=1 // pred_check
      _
    $region15: #{tpu_custom_call.1} parent=1 // pred_check_branch
      %535 = sbr.rel (0) target = $region17
    $region16: #{tpu_custom_call.1} parent=1 // pred_region
      %537 = vsyncadd [#allocation3], 0
      %s539 = sshll.u32 [#allocation2], 4
      %s540 = int_to_ptr.vmem [resolvable:$true] %s539
      %s541 = sshll.u32 %s3, 4
      %s542 = int_to_ptr.hbm [resolvable:$true] %s541
      %544 = dma.vmem_to_hbm [thread:$0]  %s540, 16, %s542, [#allocation3]
    $region17: #{tpu_custom_call.1} parent=1 // pred_fallthru
      _
    // Predicated region
    $region18: #{tpu_custom_call.1} parent=1 // pred_check
      _
    $region19: #{tpu_custom_call.1} parent=1 // pred_check_branch
      %546 = sbr.rel (0) target = $region21
    $region20: #{tpu_custom_call.1} parent=1 // pred_region
      %548 = dma.done [#allocation3], 16
    $region21: #{tpu_custom_call.1} parent=1 // pred_fallthru
      _
    %549 = vsyncpa [#allocation3], 1

</llo_original>
